<compile_context>
chip_gen: v6e
topology: v6e:2x2x1
jax: 0.10.0
libtpu: 0.0.40
codegen_flags: <defaults>
</compile_context>

<pallas_src>
import functools
import math

import jax
import jax.numpy as jnp
from jax.experimental import pallas as pl
from jax.experimental.pallas import tpu as pltpu

_DEFAULT_BLOCK_BYTES = 2 * 1024 * 1024   # ~2 MiB blocks: roofline plateau on v5e/v6e
_V7X_BLOCK_BYTES = 4 * 1024 * 1024       # larger blocks amortize step overhead at 3.2 TB/s
_WINDOW_CAP_BYTES = 3 * 1024 * 1024      # max single-window input block (VMEM safety)


@functools.lru_cache(maxsize=None)
def _target_block_bytes() -> int:
    try:
        kind = jax.devices()[0].device_kind.lower()
    except Exception:
        return _DEFAULT_BLOCK_BYTES
    if "v7" in kind or "tpu7" in kind:
        return _V7X_BLOCK_BYTES
    return _DEFAULT_BLOCK_BYTES


# --------------------------------------------------------------------------------------
# static sizing helpers (all trace-time Python)
# --------------------------------------------------------------------------------------
def _round_up(value: int, multiple: int) -> int:
    return -(-value // multiple) * multiple


def _sublane_multiple(dtype) -> int:
    """Native sublane granularity: 8 for 4-byte, 16 for 2-byte, 32 for 1-byte dtypes."""
    itemsize = jnp.dtype(dtype).itemsize
    return max(8, 32 // max(itemsize, 1))


def _pick_row_block(n_full: int, n_target: int, unit: int) -> int:
    """Block size for an (8,128)-constrained row axis: full extent or a multiple of `unit`."""
    if n_target >= n_full:
        return n_full
    blk = (n_target // unit) * unit
    if blk < unit:
        blk = min(unit, n_full)
    return blk


def _pick_inner_block(inner: int, bd: int, target_elems: int) -> int:
    """Lane-axis block of the 3-D view: full `inner` if it fits the target, else a 128-multiple."""
    if inner <= 128 or bd * inner <= target_elems:
        return inner
    ib = max(128, ((target_elems // max(bd, 1)) // 128) * 128)
    return inner if ib >= inner else ib


def _prefer_divisor(cands, n_out: int) -> int:
    """Among candidate block sizes (descending), prefer one that divides n_out (no masked
    trailing block) unless that would shrink the block by more than 2x."""
    best = cands[0]
    for cand in cands:
        if cand * 2 < best:
            break
        if n_out % cand == 0:
            return cand
    return best


def _pick_aligned_block(start: int, n_out: int, unit: int, cap_elems: int) -> int:
    """Largest sliced-axis block that is a multiple of `unit`, divides `start` (so the slice
    begins exactly on a block boundary -> only output-sized DMA), and is <= cap."""
    hi = max(unit, min((cap_elems // unit) * unit, _round_up(n_out, unit)))
    if start == 0:
        return _prefer_divisor(list(range(hi, unit - 1, -unit)), n_out)
    m = start // unit
    divs = set()
    i = 1
    while i * i <= m:
        if m % i == 0:
            divs.add(i)
            divs.add(m // i)
        i += 1
    cands = sorted((d * unit for d in divs if d * unit <= hi), reverse=True)
    if not cands:
        return unit
    return _prefer_divisor(cands, n_out)


def _covering_block(start: int, span: int, unit: int) -> int:
    """Smallest (doubling) multiple of `unit`, B, such that the single block
    [ (start // B) * B, (start // B) * B + B ) covers [start, start + span)."""
    limit = _round_up(start + span, unit)
    b = _round_up(max(span, 1), unit)
    while b < limit:
        if (start % b) + span <= b:
            return b
        b *= 2
    return limit


# --------------------------------------------------------------------------------------
# kernels
# --------------------------------------------------------------------------------------
def _copy_kernel(x_ref, o_ref):
    o_ref[...] = x_ref[...]


def _make_shift_kernel(rel: int, n_out: int, rank: int):
    """Copy the static contiguous slice [rel, rel + n_out) of axis 1 of the block."""
    def kernel(x_ref, o_ref):
        if rank == 2:
            o_ref[...] = x_ref[:, pl.ds(rel, n_out)]
        else:
            o_ref[...] = x_ref[:, pl.ds(rel, n_out), :]
    return kernel


def _make_straddle_kernel(bd: int, shift: int, rank: int):
    """Assemble output block j from two consecutive input blocks:
    out = concat(A[shift:], B[:shift]) along the sliced axis (all slices static)."""
    head = bd - shift
    def kernel(a_ref, b_ref, o_ref):
        if rank == 2:
            o_ref[:, pl.ds(0, head)] = a_ref[:, pl.ds(shift, head)]
            o_ref[:, pl.ds(head, shift)] = b_ref[:, pl.ds(0, shift)]
        else:
            o_ref[:, pl.ds(0, head), :] = a_ref[:, pl.ds(shift, head), :]
            o_ref[:, pl.ds(head, shift), :] = b_ref[:, pl.ds(0, shift), :]
    return kernel


# --------------------------------------------------------------------------------------
# pallas_call plumbing
# --------------------------------------------------------------------------------------
def _order_grid(axis_counts, index_maps):
    """Put the axis with the most blocks first so dual-TC sharding of the leading parallel
    axis (v7x) gets real work.  Pure element-wise map -> any grid order is correct."""
    n = len(axis_counts)
    order = sorted(range(n), key=lambda a: (-axis_counts[a], a))
    grid = tuple(axis_counts[a] for a in order)

    def permute(fn):
        def index_map(*gidx):
            canon = [0] * n
            for pos, axis in enumerate(order):
                canon[axis] = gidx[pos]
            return fn(*canon)
        return index_map

    return grid, [permute(fn) for fn in index_maps]


def _run(kernel, operands, out_shape, dtype, axis_counts,
         in_blocks, in_maps, out_block, out_map, bytes_accessed):
    grid, maps = _order_grid(axis_counts, list(in_maps) + [out_map])
    in_specs = [pl.BlockSpec(bs, m) for bs, m in zip(in_blocks, maps[:-1])]
    out_spec = pl.BlockSpec(out_block, maps[-1])
    return pl.pallas_call(
        kernel,
        out_shape=jax.ShapeDtypeStruct(out_shape, dtype),
        grid_spec=pltpu.PrefetchScalarGridSpec(
            num_scalar_prefetch=0,
            grid=grid,
            in_specs=in_specs,
            out_specs=out_spec,
        ),
        compiler_params=pltpu.CompilerParams(
            dimension_semantics=("parallel",) * len(grid)
        ),
        cost_estimate=pl.CostEstimate(
            flops=0, transcendentals=0, bytes_accessed=int(bytes_accessed)
        ),
    )(*operands)


# --------------------------------------------------------------------------------------
# slice of the lane (last) axis of a 2-D view (outer, dim_size)
# --------------------------------------------------------------------------------------
def _slice_lane_2d(x2, start, n_out, *, window_cap_bytes, block_bytes):
    outer, dim_size = x2.shape
    dtype = x2.dtype
    itemsize = jnp.dtype(dtype).itemsize
    sub = _sublane_multiple(dtype)
    unit = 128
    target = max(1, block_bytes // itemsize)
    min_rows = min(outer, sub)
    out_bytes = outer * n_out * itemsize

    if start % unit == 0:
        # Aligned tiled copy: only output-sized bytes are DMA'd (pure BlockSpec offset).
        bd = _pick_aligned_block(start, n_out, unit, max(unit, target // max(min_rows, 1)))
        ob = _pick_row_block(outer, max(1, target // bd), sub)
        q0 = start // bd
        axis_counts = (pl.cdiv(outer, ob), pl.cdiv(n_out, bd))
        return _run(
            _copy_kernel, (x2,), (outer, n_out), dtype, axis_counts,
            [(ob, bd)], [lambda o, j: (o, j + q0)],
            (ob, bd), lambda o, j: (o, j),
            bytes_accessed=2 * out_bytes)

    win = _covering_block(start, n_out, unit)
    if min_rows * win * itemsize <= window_cap_bytes:
        # Windowed: one lane block covers the whole slice, residual shift done in-kernel.
        # Reads ~n_out + O(128) lanes per row instead of dim_size lanes.
        ob = _pick_row_block(outer, max(1, target // win), sub)
        q0 = start // win
        rel = start - q0 * win
        axis_counts = (pl.cdiv(outer, ob),)
        read = outer * min(win, dim_size) * itemsize
        return _run(
            _make_shift_kernel(rel, n_out, rank=2), (x2,), (outer, n_out), dtype,
            axis_counts,
            [(ob, win)], [lambda o: (o, q0)],
            (ob, n_out), lambda o: (o, 0),
            bytes_accessed=read + out_bytes)

    # Straddle: tiled dual-read of consecutive input blocks; VMEM bounded for any shape,
    # reads ~2x output-sized bytes (still << full-dim reads for large inputs).
    tgt = max(1, (block_bytes // 2) // itemsize)
    bd_cap = max(unit, (max(unit, tgt // max(min_rows, 1)) // unit) * unit)
    bd = max(unit, min(bd_cap, _round_up(n_out, unit)))
    ob = _pick_row_block(outer, max(1, tgt // bd), sub)
    q0, shift = divmod(start, bd)
    nblk_in = pl.cdiv(dim_size, bd)
    axis_counts = (pl.cdiv(outer, ob), pl.cdiv(n_out, bd))
    return _run(
        _make_straddle_kernel(bd, shift, rank=2), (x2, x2), (outer, n_out), dtype,
        axis_counts,
        [(ob, bd), (ob, bd)],
        [lambda o, j: (o, j + q0),
         # clamp: when the "next" block is past the array it is never actually used
         # (those output lanes are >= n_out and masked), so any in-range block is fine.
         lambda o, j: (o, jnp.minimum(j + q0 + 1, nblk_in - 1))],
        (ob, bd), lambda o, j: (o, j),
        bytes_accessed=3 * out_bytes)


# --------------------------------------------------------------------------------------
# slice of the middle (sublane) axis of a 3-D view (outer, dim_size, inner)
# --------------------------------------------------------------------------------------
def _slice_sublane_3d(x3, start, n_out, *, window_cap_bytes, block_bytes):
    outer, dim_size, inner = x3.shape
    dtype = x3.dtype
    itemsize = jnp.dtype(dtype).itemsize
    sub = _sublane_multiple(dtype)
    unit = sub
    target = max(1, block_bytes // itemsize)
    min_ib = min(inner, 128)
    out_bytes = outer * n_out * inner * itemsize

    if start % unit == 0:
        bd = _pick_aligned_block(start, n_out, unit, max(unit, target // max(min_ib, 1)))
        ib = _pick_inner_block(inner, bd, target)
        ob = max(1, min(outer, target // max(bd * ib, 1)))
        q0 = start // bd
        axis_counts = (pl.cdiv(outer, ob), pl.cdiv(n_out, bd), pl.cdiv(inner, ib))
        return _run(
            _copy_kernel, (x3,), (outer, n_out, inner), dtype, axis_counts,
            [(ob, bd, ib)], [lambda o, j, i: (o, j + q0, i)],
            (ob, bd, ib), lambda o, j, i: (o, j, i),
            bytes_accessed=2 * out_bytes)

    win = _covering_block(start, n_out, unit)
    if win * min_ib * itemsize <= window_cap_bytes:
        ib = _pick_inner_block(inner, win, target)
        ob = max(1, min(outer, target // max(win * ib, 1)))
        q0 = start // win
        rel = start - q0 * win
        axis_counts = (pl.cdiv(outer, ob), pl.cdiv(inner, ib))
        read = outer * min(win, dim_size) * inner * itemsize
        return _run(
            _make_shift_kernel(rel, n_out, rank=3), (x3,), (outer, n_out, inner), dtype,
            axis_counts,
            [(ob, win, ib)], [lambda o, i: (o, q0, i)],
            (ob, n_out, ib), lambda o, i: (o, 0, i),
            bytes_accessed=read + out_bytes)

    tgt = max(1, (block_bytes // 2) // itemsize)
    bd_cap = max(unit, (max(unit, tgt // max(min_ib, 1)) // unit) * unit)
    bd = max(unit, min(bd_cap, _round_up(n_out, unit)))
    ib = _pick_inner_block(inner, bd, tgt)
    ob = max(1, min(outer, tgt // max(bd * ib, 1)))
    q0, shift = divmod(start, bd)
    nblk_in = pl.cdiv(dim_size, bd)
    axis_counts = (pl.cdiv(outer, ob), pl.cdiv(n_out, bd), pl.cdiv(inner, ib))
    return _run(
        _make_straddle_kernel(bd, shift, rank=3), (x3, x3), (outer, n_out, inner), dtype,
        axis_counts,
        [(ob, bd, ib), (ob, bd, ib)],
        [lambda o, j, i: (o, j + q0, i),
         lambda o, j, i: (o, jnp.minimum(j + q0 + 1, nblk_in - 1), i)],
        (ob, bd, ib), lambda o, j, i: (o, j, i),
        bytes_accessed=3 * out_bytes)


# --------------------------------------------------------------------------------------
# public wrapper
# --------------------------------------------------------------------------------------
def slicing(x: jax.Array, dim: int = 0, start: int = 0, end=None, step: int = 1,
            *, _window_cap_bytes=None, _block_bytes=None) -> jax.Array:
    """Forward pass of the Slicing layer (values match torch.index_select on arange)."""
    if step < 1:
        raise ValueError("slicing: only positive step is supported")
    ndim = x.ndim
    if ndim == 0:
        raise ValueError("slicing: input must have at least one dimension")
    if not (-ndim <= dim < ndim):
        raise ValueError(f"slicing: dim {dim} out of range for {ndim}-D input")
    d = dim % ndim
    dim_size = x.shape[d]

    # --- static index normalization (mirrors the PyTorch module exactly) ---
    s = start if start >= 0 else dim_size + start
    s = max(min(s, dim_size), 0)
    e = end or dim_size  # NB: end == 0 is treated like None (PyTorch module quirk)
    e = e if e >= 0 else dim_size + e
    e = max(min(e, dim_size), 0)

    out_shape = list(x.shape)
    if s >= e:
        out_shape[d] = 0
        return jnp.zeros(tuple(out_shape), dtype=x.dtype)

    n_out = -(-(e - s) // step)
    out_shape[d] = n_out
    out_shape = tuple(out_shape)

    if any(sz == 0 for sz in out_shape):
        return jnp.zeros(out_shape, dtype=x.dtype)
    if s == 0 and e == dim_size and step == 1:
        return x  # whole-tensor slice == identity; no data movement needed

    if step != 1:
        # TODO(synk): step > 1 uses a plain XLA strided slice; strided lane/sublane
        # Pallas ref reads (pl.ds stride) are not verified on TPU here, so we keep the
        # rare strided case off the Pallas paths rather than risk a bad lowering.
        idx = tuple(slice(s, e, step) if i == d else slice(None) for i in range(ndim))
        return x[idx]

    outer = math.prod(x.shape[:d])
    inner = math.prod(x.shape[d + 1:])
    window_cap = _WINDOW_CAP_BYTES if _window_cap_bytes is None else _window_cap_bytes
    block_bytes = _target_block_bytes() if _block_bytes is None else _block_bytes

    if inner == 1:
        # Free (contiguous) reshape to a lane-dense 2-D view; slice on the lane axis.
        y = _slice_lane_2d(x.reshape(outer, dim_size), s, n_out,
                           window_cap_bytes=window_cap, block_bytes=block_bytes)
    else:
        y = _slice_sublane_3d(x.reshape(outer, dim_size, inner), s, n_out,
                              window_cap_bytes=window_cap, block_bytes=block_bytes)
    return y.reshape(out_shape)


class Slicing:
    """Pallas-TPU equivalent of refiners' fl.Slicing layer."""

    def __init__(self, dim: int = 0, start: int = 0, end=None, step: int = 1):
        self.dim = dim
        self.start = start
        self.end = end
        self.step = step

    def __call__(self, x: jax.Array) -> jax.Array:
        return slicing(x, dim=self.dim, start=self.start, end=self.end, step=self.step)


if __name__ == "__main__":
    key = jax.random.PRNGKey(0)
    ks = jax.random.split(key, 10)

    # 1) docstring example -> lane-axis, unaligned windowed path
    x1 = jax.random.normal(ks[0], (10, 100), dtype=jnp.float32)
    y1 = Slicing(dim=1, start=50)(x1)
    jax.block_until_ready(y1)
    assert y1.shape == (10, 50) and y1.dtype == x1.dtype
    assert bool(jnp.array_equal(y1, x1[:, 50:]))

    # 2) 4-D activation -> sublane-axis, unaligned windowed path
    x2 = jax.random.normal(ks[1], (2, 4, 16, 16), dtype=jnp.float32)
    y2 = Slicing(dim=1, start=1, end=3)(x2)
    jax.block_until_ready(y2)
    assert y2.shape == (2, 2, 16, 16) and bool(jnp.array_equal(y2, x2[:, 1:3]))

    # 3) sublane-aligned tiled copy path (3-D view, several blocks along the sliced axis)
    x3 = jax.random.normal(ks[2], (8, 256, 128), dtype=jnp.float32)
    y3 = Slicing(dim=1, start=64, end=192)(x3)
    jax.block_until_ready(y3)
    assert y3.shape == (8, 128, 128) and bool(jnp.array_equal(y3, x3[:, 64:192, :]))

    # 4) lane-aligned tiled copy path (2-D view)
    x4 = jax.random.normal(ks[3], (16, 512), dtype=jnp.float32)
    y4 = Slicing(dim=1, start=128, end=384)(x4)
    jax.block_until_ready(y4)
    assert y4.shape == (16, 256) and bool(jnp.array_equal(y4, x4[:, 128:384]))

    # 5) negative dim / start / end
    x5 = jax.random.normal(ks[4], (6, 64), dtype=jnp.float32)
    y5 = Slicing(dim=-1, start=-32, end=-8)(x5)
    jax.block_until_ready(y5)
    assert y5.shape == (6, 24) and bool(jnp.array_equal(y5, x5[:, 32:56]))

    # 6) bf16 aligned sublane path (16-row sublane granularity)
    x6 = jax.random.normal(ks[5], (4, 32, 256), dtype=jnp.bfloat16)
    y6 = Slicing(dim=1, start=16)(x6)
    jax.block_until_ready(y6)
    assert y6.shape == (4, 16, 256) and y6.dtype == jnp.bfloat16
    assert bool(jnp.array_equal(y6, x6[:, 16:, :]))

    # 7) straddle (bounded-VMEM) paths, forced via small caps so the test stays small
    x7 = jax.random.normal(ks[6], (16, 512), dtype=jnp.float32)
    y7 = slicing(x7, dim=1, start=5, end=305, _window_cap_bytes=1, _block_bytes=4096)
    jax.block_until_ready(y7)
    assert y7.shape == (16, 300) and bool(jnp.array_equal(y7, x7[:, 5:305]))

    x8 = jax.random.normal(ks[7], (2, 520, 128), dtype=jnp.float32)
    y8 = slicing(x8, dim=1, start=3, end=403, _window_cap_bytes=1, _block_bytes=65536)
    jax.block_until_ready(y8)
    assert y8.shape == (2, 400, 128) and bool(jnp.array_equal(y8, x8[:, 3:403, :]))

    # straddle with the "next block" clamped at the array edge
    x9 = jax.random.normal(ks[8], (8, 256), dtype=jnp.float32)
    y9 = slicing(x9, dim=1, start=1, end=256, _window_cap_bytes=1)
    jax.block_until_ready(y9)
    assert y9.shape == (8, 255) and bool(jnp.array_equal(y9, x9[:, 1:256]))

    # 8) 1-D input, dim=0 -> 2-D (1, N) view, windowed path
    x10 = jax.random.normal(ks[9], (1000,), dtype=jnp.float32)
    y10 = Slicing(dim=0, start=7, end=200)(x10)
    jax.block_until_ready(y10)
    assert y10.shape == (193,) and bool(jnp.array_equal(y10, x10[7:200]))

    # 9) empty slice, identity, end=0 quirk, strided (XLA fallback)
    xa = jax.random.normal(key, (4, 8), dtype=jnp.float32)
    assert Slicing(dim=0, start=5, end=3)(xa).shape == (0, 8)
    assert bool(jnp.array_equal(Slicing(dim=0)(xa), xa))
    assert bool(jnp.array_equal(Slicing(dim=1, end=0)(xa), xa))  # end=0 acts like None (module quirk)
    xb = jax.random.normal(key, (4, 10, 6), dtype=jnp.float32)
    yb = Slicing(dim=1, start=1, end=9, step=2)(xb)
    assert yb.shape == (4, 4, 6) and bool(jnp.array_equal(yb, xb[:, 1:9:2, :]))

    print("KERNEL_OK")
</pallas_src>

<mosaic_0001>
module attributes {stable_mosaic.version = 11 : i64} {
  func.func @kernel(%arg0: i32, %arg1: memref<10x128xf32, #tpu.memory_space<vmem>>, %arg2: memref<10x50xf32, #tpu.memory_space<vmem>>) attributes {dimension_semantics = [#tpu.dimension_semantics<parallel>], iteration_bounds = array<i64: 1>, scalar_prefetch = 0 : i64, scratch_operands = 0 : i64, tpu.core_type = #tpu.core_type<tc>, window_params = [{transform_indices = @transform_0, window_bounds = array<i64: 10, 128>}, {transform_indices = @transform_1, window_bounds = array<i64: 10, 50>}]} {
    %c0 = arith.constant 0 : index
    %c50 = arith.constant 50 : index
    %0 = vector.load %arg1[%c0, %c50] : memref<10x128xf32, #tpu.memory_space<vmem>>, vector<10x50xf32>
    %c0_0 = arith.constant 0 : index
    %c0_1 = arith.constant 0 : index
    %1 = vector.load %arg2[%c0_0, %c0_1] : memref<10x50xf32, #tpu.memory_space<vmem>>, vector<10x50xf32>
    tpu.vector_store %arg2[%c0_0, %c0_1], %0 {strides = array<i32>} : memref<10x50xf32, #tpu.memory_space<vmem>>, vector<10x50xf32>,
    return
  }
  func.func @transform_0(%arg0: i32) -> (i32, i32) {
    %c0_i32 = arith.constant 0 : i32
    %c0_i32_0 = arith.constant 0 : i32
    return %arg0, %c0_i32 : i32, i32
  }
  func.func @transform_1(%arg0: i32) -> (i32, i32) {
    %c0_i32 = arith.constant 0 : i32
    %c0_i32_0 = arith.constant 0 : i32
    return %arg0, %c0_i32 : i32, i32
  }
}

</mosaic_0001>

<llo_original>
// kernel: tpu_custom_call.1
$region0: #{tpu_custom_call.1}
  #allocation0 [shape = 'u32[]', space=smem, size = 0x4, offset = 0x4, fixed_abs, tag = 'smem constant byte address 0x4 - core index']
  #allocation1 [shape = 'u32[144,128]{1,0:T(1,128)}', space=vmem, size = 0x12000, scoped, tag = 'internal scratch']
  %s0 = inlined_call_operand.hbm [shape: f32[10,100], index: 0, kind: input, shape index: {}]
  %s1 = inlined_call_operand.hbm [shape: f32[10,50], index: 1, kind: output, shape index: {}]
  %s2 = sld [smem:[#allocation0]]
  $region18: #{tpu_custom_call.1} parent=0
    _
  %s4 = ssub.s32 1, %s2
  %s5 = scalar_select 0, %s4, %s2
  $region1: #{tpu_custom_call.1} parent=0
    #allocation2 [shape = 'u8[8192]{0}', space=vmem, size = 0x2000, scoped, tag = 'input window, operand 0, single buffered']
    #allocation3 [shape = 's32[1]{0}', space=sflag, size = 0x4, scoped, tag = 'scoped memory for tpu_custom_call.1']
    #allocation4 [shape = 's32[1]{0}', space=sflag, size = 0x4, scoped, tag = 'scoped memory for tpu_custom_call.1']
    #allocation5 [shape = 'u8[8192]{0}', space=vmem, size = 0x2000, scoped, tag = 'output window, operand 0, single buffered']
    %6 = vsyncpa [#allocation3], 0
    %7 = vsyncpa [#allocation4], 0
    // Predicated region
    $region2: #{tpu_custom_call.1} parent=1 // pred_check
      _
    $region3: #{tpu_custom_call.1} parent=1 // pred_check_branch
      %9 = sbr.rel (0) target = $region5
    $region4: #{tpu_custom_call.1} parent=1 // pred_region
      %s11 = ssub.s32 256, 256
      %12 = vsyncadd [#allocation3], %s11
      %s13 = sshll.u32 [#allocation2], 4
      %s14 = int_to_ptr.vmem [resolvable:$true] %s13
      %19 = dma.hbm_to_vmem [thread:$0]  %s0, 256, %s14, [#allocation3], 128, 128, 8
    $region5: #{tpu_custom_call.1} parent=1 // pred_fallthru
      _
    // Predicated region
    $region6: #{tpu_custom_call.1} parent=1 // pred_check
      _
    $region7: #{tpu_custom_call.1} parent=1 // pred_check_branch
      %21 = sbr.rel (0) target = $region9
    $region8: #{tpu_custom_call.1} parent=1 // pred_region
      %22 = dma.done [#allocation3], 256
    $region9: #{tpu_custom_call.1} parent=1 // pred_fallthru
      _
    %v23 = vld [vmem:[#allocation2] sm:$0xff]
    %v24 = vld [vmem:[#allocation2 + $0x8] sm:$0x3]
    %27 = vrot.lane.b32.xlu0 %v23, 78
    %v28 = vpop.permute.xlu0 %27
    %29 = vrot.lane.b32.xlu0 %v24, 78
    %v30 = vpop.permute.xlu0 %29
    %vm33 = vcmask 408576
    %34 = vst.msk [vmem:[#allocation5] sm:$0xff] %vm33, %v28
    %vm35 = vcmask 402432
    %36 = vst.msk [vmem:[#allocation5 + $0x8] sm:$0x3] %vm35, %v30
    // Predicated region
    $region10: #{tpu_custom_call.1} parent=1 // pred_check
      _
    $region11: #{tpu_custom_call.1} parent=1 // pred_check_branch
      %38 = sbr.rel (0) target = $region13
    $region12: #{tpu_custom_call.1} parent=1 // pred_region
      %s40 = ssub.s32 256, 256
      %41 = vsyncadd [#allocation4], %s40
      %s42 = sshll.u32 [#allocation5], 4
      %s43 = int_to_ptr.vmem [resolvable:$true] %s42
      %48 = dma.vmem_to_hbm [thread:$0]  %s43, 256, %s1, [#allocation4], 128, 128, 8
    $region13: #{tpu_custom_call.1} parent=1 // pred_fallthru
      _
    // Predicated region
    $region14: #{tpu_custom_call.1} parent=1 // pred_check
      _
    $region15: #{tpu_custom_call.1} parent=1 // pred_check_branch
      %50 = sbr.rel (0) target = $region17
    $region16: #{tpu_custom_call.1} parent=1 // pred_region
      %51 = dma.done [#allocation4], 256
    $region17: #{tpu_custom_call.1} parent=1 // pred_fallthru
      _
    %52 = vsyncpa [#allocation3], 1
    %53 = vsyncpa [#allocation4], 1

</llo_original>
